<compile_context>
chip_gen: v5e
topology: v5e:2x2
jax: 0.10.0
libtpu: 0.0.40
codegen_flags: <defaults>
</compile_context>

<pallas_src>
import jax
import jax.numpy as jnp
from jax import lax
from jax.experimental import pallas as pl
from jax.experimental.pallas import tpu as pltpu


def srv_dqn_kernel(x_ref, w1_ref, b1_ref, w2_ref, b2_ref, w3t_ref, b3t_ref, ot_ref):
    # x block: (TILE_B, n_in). Weights are VMEM-resident across the grid.
    x = x_ref[...].astype(jnp.bfloat16)

    # Layer 1: (TILE_B, n_in) @ (n_in, h1) -> (TILE_B, h1), f32 accumulate.
    l1 = jnp.dot(x, w1_ref[...].astype(jnp.bfloat16),
                 preferred_element_type=jnp.float32) + b1_ref[...]
    h1 = jax.nn.sigmoid(l1)

    # Layer 2: (TILE_B, h1) @ (h1, h2) -> (TILE_B, h2).
    l2 = jnp.dot(h1.astype(jnp.bfloat16), w2_ref[...].astype(jnp.bfloat16),
                 preferred_element_type=jnp.float32) + b2_ref[...]
    h2 = jax.nn.sigmoid(l2)

    # Layer 3 computed directly in transposed (n_out, TILE_B) orientation so the
    # large batch dim maps to lanes -> lane-dense (unmasked) output stores.
    #   l3t[o, b] = sum_k w3t[o, k] * h2[b, k]      (w3t is PyTorch-layout (out, in))
    l3t = lax.dot_general(
        w3t_ref[...].astype(jnp.bfloat16), h2.astype(jnp.bfloat16),
        dimension_numbers=(((1,), (1,)), ((), ())),
        preferred_element_type=jnp.float32) + b3t_ref[...]      # (n_out, TILE_B)

    ot_ref[...] = jax.nn.sigmoid(jnp.maximum(l3t, 0.0))         # sigmoid(relu(.))


def _round_up(a, m):
    return (a + m - 1) // m * m


def srv_dqn_forward(x, params, tile_b=1024):
    """x: (B, n_inputs) f32; params: dict of w1,b1,w2,b2,w3,b3 (f32, W as (in,out))."""
    w1, b1, w2, b2, w3, b3 = (params[k] for k in ("w1", "b1", "w2", "b2", "w3", "b3"))
    B, n_in = x.shape
    h1 = w1.shape[1]
    h2 = w2.shape[1]
    n_out = w3.shape[1]

    # Batch tiling: big tiles amortize the ~0.35 us/step pipeline overhead.
    tile = tile_b if B >= tile_b else _round_up(B, 8)
    B_pad = _round_up(B, tile)
    x_p = jnp.pad(x, ((0, B_pad - B), (0, 0))) if B_pad != B else x

    # Last layer is consumed in PyTorch (out, in) layout; bias as a (n_out, 1)
    # column so it broadcasts over the lane (batch) axis inside the kernel.
    w3_t = w3.T            # (n_out, h2)
    b3_t = b3.T            # (n_out, 1)

    grid = (B_pad // tile,)

    def resident(a):       # whole array, same block every grid step -> stays in VMEM
        return pl.BlockSpec(a.shape, lambda i: (0, 0))

    flops = 2 * B_pad * (n_in * h1 + h1 * h2 + h2 * n_out)
    transcendentals = B_pad * (h1 + h2 + n_out)                      # sigmoids
    bytes_accessed = 4 * (x_p.size + B_pad * n_out
                          + w1.size + b1.size + w2.size + b2.size + w3.size + b3.size)

    out_t = pl.pallas_call(
        srv_dqn_kernel,
        out_shape=jax.ShapeDtypeStruct((n_out, B_pad), jnp.float32),
        grid_spec=pltpu.PrefetchScalarGridSpec(
            num_scalar_prefetch=0,
            grid=grid,
            in_specs=[
                pl.BlockSpec((tile, n_in), lambda i: (i, 0)),        # streamed x
                resident(w1), resident(b1),
                resident(w2), resident(b2),
                resident(w3_t), resident(b3_t),
            ],
            out_specs=pl.BlockSpec((n_out, tile), lambda i: (0, i)),  # lane-dense
        ),
        compiler_params=pltpu.CompilerParams(dimension_semantics=("parallel",)),
        cost_estimate=pl.CostEstimate(flops=flops,
                                      transcendentals=transcendentals,
                                      bytes_accessed=bytes_accessed),
    )(x_p, w1, b1, w2, b2, w3_t, b3_t)

    # Back to the module's (B, n_out) orientation; drop batch padding.
    return out_t.T[:B]


def init_params(key, n_inputs, n_neurons_per_layers, n_outputs):
    """Deterministic init mimicking nn.Linear's U(-1/sqrt(fan_in), 1/sqrt(fan_in))."""
    dims = [n_inputs, n_neurons_per_layers[0], n_neurons_per_layers[1], n_outputs]
    params = {}
    keys = jax.random.split(key, 6)
    for i in range(3):
        fan_in, fan_out = dims[i], dims[i + 1]
        bound = 1.0 / (fan_in ** 0.5)
        params[f"w{i+1}"] = jax.random.uniform(
            keys[2 * i], (fan_in, fan_out), jnp.float32, -bound, bound)
        params[f"b{i+1}"] = jax.random.uniform(
            keys[2 * i + 1], (1, fan_out), jnp.float32, -bound, bound)
    return params


def reference_forward(x, params):
    h1 = jax.nn.sigmoid(x @ params["w1"] + params["b1"])
    h2 = jax.nn.sigmoid(h1 @ params["w2"] + params["b2"])
    l3 = h2 @ params["w3"] + params["b3"]
    return jax.nn.sigmoid(jnp.maximum(l3, 0.0))


if __name__ == "__main__":
    # Module-consistent small shapes: n_inputs=16, hidden=[32,32], n_outputs=8.
    # batch=500 with tile_b=128 exercises the batch grid (4 steps), the
    # VMEM-resident weights, the lane-dense transposed output and the
    # pad-to-tile path.
    n_inputs = 16
    n_neurons_per_layers = [32, 32]
    n_outputs = 8
    batch = 500

    key = jax.random.PRNGKey(0)
    k_x, k_p = jax.random.split(key)
    x = jax.random.normal(k_x, (batch, n_inputs), jnp.float32)
    params = init_params(k_p, n_inputs, n_neurons_per_layers, n_outputs)

    fwd = jax.jit(lambda xx, pp: srv_dqn_forward(xx, pp, tile_b=128))
    out = jax.block_until_ready(fwd(x, params))
    ref = reference_forward(x, params)

    assert out.shape == (batch, n_outputs), out.shape
    # bf16 MXU operands with f32 accumulation -> loosened tolerance (expected).
    err = float(jnp.max(jnp.abs(out - ref)))
    assert jnp.allclose(out, ref, atol=2e-2, rtol=2e-2), err
    print("KERNEL_OK")
</pallas_src>

<mosaic_0001>
module attributes {stable_mosaic.version = 11 : i64} {
  func.func @srv_dqn_kernel(%arg0: i32, %arg1: memref<128x16xf32, #tpu.memory_space<vmem>>, %arg2: memref<16x32xf32, #tpu.memory_space<vmem>>, %arg3: memref<1x32xf32, #tpu.memory_space<vmem>>, %arg4: memref<32x32xf32, #tpu.memory_space<vmem>>, %arg5: memref<1x32xf32, #tpu.memory_space<vmem>>, %arg6: memref<8x32xf32, #tpu.memory_space<vmem>>, %arg7: memref<8x1xf32, #tpu.memory_space<vmem>>, %arg8: memref<8x128xf32, #tpu.memory_space<vmem>>) attributes {dimension_semantics = [#tpu.dimension_semantics<parallel>], iteration_bounds = array<i64: 4>, scalar_prefetch = 0 : i64, scratch_operands = 0 : i64, tpu.core_type = #tpu.core_type<tc>, window_params = [{transform_indices = @transform_0, window_bounds = array<i64: 128, 16>}, {pipeline_mode = #tpu.pipeline_mode<synchronous>, transform_indices = @transform_1, window_bounds = array<i64: 16, 32>}, {pipeline_mode = #tpu.pipeline_mode<synchronous>, transform_indices = @transform_2, window_bounds = array<i64: 1, 32>}, {pipeline_mode = #tpu.pipeline_mode<synchronous>, transform_indices = @transform_3, window_bounds = array<i64: 32, 32>}, {pipeline_mode = #tpu.pipeline_mode<synchronous>, transform_indices = @transform_4, window_bounds = array<i64: 1, 32>}, {pipeline_mode = #tpu.pipeline_mode<synchronous>, transform_indices = @transform_5, window_bounds = array<i64: 8, 32>}, {pipeline_mode = #tpu.pipeline_mode<synchronous>, transform_indices = @transform_6, window_bounds = array<i64: 8, 1>}, {transform_indices = @transform_7, window_bounds = array<i64: 8, 128>}]} {
    %c0 = arith.constant 0 : index
    %c0_0 = arith.constant 0 : index
    %0 = vector.load %arg1[%c0, %c0_0] : memref<128x16xf32, #tpu.memory_space<vmem>>, vector<128x16xf32>
    %1 = arith.truncf %0 : vector<128x16xf32> to vector<128x16xbf16>
    %c0_1 = arith.constant 0 : index
    %c0_2 = arith.constant 0 : index
    %2 = vector.load %arg2[%c0_1, %c0_2] : memref<16x32xf32, #tpu.memory_space<vmem>>, vector<16x32xf32>
    %3 = arith.truncf %2 : vector<16x32xf32> to vector<16x32xbf16>
    %cst = arith.constant dense<0.000000e+00> : vector<128x32xf32>
    %4 = tpu.matmul %1, %3, %cst {dimension_numbers = #tpu.dot_dimension_numbers<[1], [0], [0], [1], [0, 0, 1, 1], [], []>} : vector<128x16xbf16>, vector<16x32xbf16>, vector<128x32xf32> -> vector<128x32xf32>
    %c0_3 = arith.constant 0 : index
    %c0_4 = arith.constant 0 : index
    %5 = vector.load %arg3[%c0_3, %c0_4] : memref<1x32xf32, #tpu.memory_space<vmem>>, vector<1x32xf32>
    %6 = vector.broadcast %5 : vector<1x32xf32> to vector<128x32xf32>
    %7 = arith.addf %4, %6 : vector<128x32xf32>
    %8 = arith.negf %7 : vector<128x32xf32>
    %9 = math.exp %8 : vector<128x32xf32>
    %cst_5 = arith.constant 1.000000e+00 : f32
    %10 = vector.broadcast %cst_5 : f32 to vector<128x32xf32>
    %11 = arith.addf %10, %9 : vector<128x32xf32>
    %12 = arith.divf %10, %11 : vector<128x32xf32>
    %13 = arith.truncf %12 : vector<128x32xf32> to vector<128x32xbf16>
    %c0_6 = arith.constant 0 : index
    %c0_7 = arith.constant 0 : index
    %14 = vector.load %arg4[%c0_6, %c0_7] : memref<32x32xf32, #tpu.memory_space<vmem>>, vector<32x32xf32>
    %15 = arith.truncf %14 : vector<32x32xf32> to vector<32x32xbf16>
    %cst_8 = arith.constant dense<0.000000e+00> : vector<128x32xf32>
    %16 = tpu.matmul %13, %15, %cst_8 {dimension_numbers = #tpu.dot_dimension_numbers<[1], [0], [0], [1], [0, 0, 1, 1], [], []>} : vector<128x32xbf16>, vector<32x32xbf16>, vector<128x32xf32> -> vector<128x32xf32>
    %c0_9 = arith.constant 0 : index
    %c0_10 = arith.constant 0 : index
    %17 = vector.load %arg5[%c0_9, %c0_10] : memref<1x32xf32, #tpu.memory_space<vmem>>, vector<1x32xf32>
    %18 = vector.broadcast %17 : vector<1x32xf32> to vector<128x32xf32>
    %19 = arith.addf %16, %18 : vector<128x32xf32>
    %20 = arith.negf %19 : vector<128x32xf32>
    %21 = math.exp %20 : vector<128x32xf32>
    %cst_11 = arith.constant 1.000000e+00 : f32
    %22 = vector.broadcast %cst_11 : f32 to vector<128x32xf32>
    %23 = arith.addf %22, %21 : vector<128x32xf32>
    %24 = arith.divf %22, %23 : vector<128x32xf32>
    %c0_12 = arith.constant 0 : index
    %c0_13 = arith.constant 0 : index
    %25 = vector.load %arg6[%c0_12, %c0_13] : memref<8x32xf32, #tpu.memory_space<vmem>>, vector<8x32xf32>
    %26 = arith.truncf %25 : vector<8x32xf32> to vector<8x32xbf16>
    %27 = arith.truncf %24 : vector<128x32xf32> to vector<128x32xbf16>
    %cst_14 = arith.constant dense<0.000000e+00> : vector<8x128xf32>
    %28 = tpu.matmul %26, %27, %cst_14 {dimension_numbers = #tpu.dot_dimension_numbers<[1], [1], [0], [0], [0, 0, 1, 0], [], []>} : vector<8x32xbf16>, vector<128x32xbf16>, vector<8x128xf32> -> vector<8x128xf32>
    %c0_15 = arith.constant 0 : index
    %c0_16 = arith.constant 0 : index
    %29 = vector.load %arg7[%c0_15, %c0_16] : memref<8x1xf32, #tpu.memory_space<vmem>>, vector<8x1xf32>
    %30 = vector.broadcast %29 : vector<8x1xf32> to vector<8x128xf32>
    %31 = arith.addf %28, %30 : vector<8x128xf32>
    %cst_17 = arith.constant 0.000000e+00 : f32
    %32 = vector.broadcast %cst_17 : f32 to vector<8x128xf32>
    %33 = arith.maximumf %31, %32 : vector<8x128xf32>
    %34 = arith.negf %33 : vector<8x128xf32>
    %35 = math.exp %34 : vector<8x128xf32>
    %cst_18 = arith.constant 1.000000e+00 : f32
    %36 = vector.broadcast %cst_18 : f32 to vector<8x128xf32>
    %37 = arith.addf %36, %35 : vector<8x128xf32>
    %38 = arith.divf %36, %37 : vector<8x128xf32>
    %c0_19 = arith.constant 0 : index
    %c0_20 = arith.constant 0 : index
    %39 = vector.load %arg8[%c0_19, %c0_20] : memref<8x128xf32, #tpu.memory_space<vmem>>, vector<8x128xf32>
    tpu.vector_store %arg8[%c0_19, %c0_20], %38 {strides = array<i32>} : memref<8x128xf32, #tpu.memory_space<vmem>>, vector<8x128xf32>,
    return
  }
  func.func @transform_0(%arg0: i32) -> (i32, i32) {
    %c0_i32 = arith.constant 0 : i32
    %c0_i32_0 = arith.constant 0 : i32
    return %arg0, %c0_i32 : i32, i32
  }
  func.func @transform_1(%arg0: i32) -> (i32, i32) {
    %c0_i32 = arith.constant 0 : i32
    %c0_i32_0 = arith.constant 0 : i32
    %c0_i32_1 = arith.constant 0 : i32
    return %c0_i32, %c0_i32_0 : i32, i32
  }
  func.func @transform_2(%arg0: i32) -> (i32, i32) {
    %c0_i32 = arith.constant 0 : i32
    %c0_i32_0 = arith.constant 0 : i32
    %c0_i32_1 = arith.constant 0 : i32
    return %c0_i32, %c0_i32_0 : i32, i32
  }
  func.func @transform_3(%arg0: i32) -> (i32, i32) {
    %c0_i32 = arith.constant 0 : i32
    %c0_i32_0 = arith.constant 0 : i32
    %c0_i32_1 = arith.constant 0 : i32
    return %c0_i32, %c0_i32_0 : i32, i32
  }
  func.func @transform_4(%arg0: i32) -> (i32, i32) {
    %c0_i32 = arith.constant 0 : i32
    %c0_i32_0 = arith.constant 0 : i32
    %c0_i32_1 = arith.constant 0 : i32
    return %c0_i32, %c0_i32_0 : i32, i32
  }
  func.func @transform_5(%arg0: i32) -> (i32, i32) {
    %c0_i32 = arith.constant 0 : i32
    %c0_i32_0 = arith.constant 0 : i32
    %c0_i32_1 = arith.constant 0 : i32
    return %c0_i32, %c0_i32_0 : i32, i32
  }
  func.func @transform_6(%arg0: i32) -> (i32, i32) {
    %c0_i32 = arith.constant 0 : i32
    %c0_i32_0 = arith.constant 0 : i32
    %c0_i32_1 = arith.constant 0 : i32
    return %c0_i32, %c0_i32_0 : i32, i32
  }
  func.func @transform_7(%arg0: i32) -> (i32, i32) {
    %c0_i32 = arith.constant 0 : i32
    %c0_i32_0 = arith.constant 0 : i32
    return %c0_i32, %arg0 : i32, i32
  }
}

</mosaic_0001>

<llo_original>
// kernel: _lambda_.1
$region0: #{_lambda_.1}
  #allocation0 [shape = 'u32[]', space=smem, size = 0x4, offset = 0x4, fixed_abs, tag = 'smem constant byte address 0x4 - core index']
  #allocation1 [shape = 'u32[72,128]{1,0:T(1,128)}', space=vmem, size = 0x9000, scoped, tag = 'internal scratch']
  %s0 = inlined_call_operand.vmem [shape: f32[512,16], index: 0, kind: input, shape index: {}]
  %s1 = inlined_call_operand.vmem [shape: f32[16,32], index: 1, kind: input, shape index: {}]
  %s2 = inlined_call_operand.vmem [shape: f32[1,32], index: 2, kind: input, shape index: {}]
  %s3 = inlined_call_operand.vmem [shape: f32[32,32], index: 3, kind: input, shape index: {}]
  %s4 = inlined_call_operand.vmem [shape: f32[1,32], index: 4, kind: input, shape index: {}]
  %s5 = inlined_call_operand.vmem [shape: f32[8,32], index: 5, kind: input, shape index: {}]
  %s6 = inlined_call_operand.vmem [shape: f32[8,1], index: 6, kind: input, shape index: {}]
  %s7 = inlined_call_operand.hbm [shape: f32[8,512], index: 7, kind: output, shape index: {}]
  %s8 = sld [smem:[#allocation0]]
  $region61: #{_lambda_.1} parent=0
    _
  %s10 = ssub.s32 1, %s8
  %s11 = scalar_select 0, %s10, %s8
  $region1: #{_lambda_.1} parent=0
    #allocation2 [shape = 'u8[8192]{0}', space=vmem, size = 0x2000, scoped, tag = 'output window, operand 0']
    #allocation3 [shape = 's32[2]{0}', space=sflag, size = 0x8, scoped, tag = 'scoped memory for _lambda_.1']
    %12 = vsyncpa [#allocation3], 0
    %s13 = scalar_lea.sflag [#allocation3], 1
    %14 = vsyncpa %s13, 0
    loop: start=0, step=1, limit=6
    $region2: #{_lambda_.1} parent=1 // loop_pre_header
      _
    $region3: #{_lambda_.1} parent=1 // loop_header
      %s16 = sphi 0, %s20
      %p17 = scmp.ge.s32.totalorder %s16, 6
      %s26 = sphi 0, %s28
      %s29 = sphi 0, %s26
      %s30 = sphi 0, %s29
      %s46 = sphi 0, %s30
      %s50 = sphi 0, %s50
      %s52 = sphi 0, %s50
      %s53 = sphi 0, %s52
      %s67 = sphi 0, %s53
      %s71 = sphi 0, %s71
      %s73 = sphi 0, %s71
      %s74 = sphi 0, %s73
      %s88 = sphi 0, %s74
      %s92 = sphi 0, %s92
      %s94 = sphi 0, %s92
      %s95 = sphi 0, %s94
      %s109 = sphi 0, %s95
      %s113 = sphi 0, %s113
      %s115 = sphi 0, %s113
      %s116 = sphi 0, %s115
      %s130 = sphi 0, %s116
      %s134 = sphi 0, %s134
      %s136 = sphi 0, %s134
      %s137 = sphi 0, %s136
      %s151 = sphi 0, %s137
      %s155 = sphi 0, %s155
      %s157 = sphi 0, %s155
      %s158 = sphi 0, %s157
      %s172 = sphi 0, %s158
      %s178 = sphi 0, %s180
      %s181 = sphi 0, %s178
      %s182 = sphi 0, %s181
      %s198 = sphi 0, %s182
    $region4: #{_lambda_.1} parent=1 // loop_header_branch
      %19 = sbr.rel (%p17) target = $region8
    $region5: #{_lambda_.1} parent=1 // loop_body
      %s21 = ssub.s32 %s16, 1
      %s22 = ssub.s32 %s16, 2
      %s23 = sadd.s32 %s16, 1
      %s24 = ssub.s32 %s16, %s23
      %p25 = scmp.eq.s32.totalorder %s24, 0
      %s27 = sadd.s32 %s26, 1
      %s28 = scalar_select %p25, %s26, %s27
      %p31 = pneg %p25
      %p32 = scmp.eq.s32.totalorder %s16, 3
      %p33 = por %p31, %p32
      %p34 = scmp.ne.s32.totalorder %s26, %s29
      %p35 = scmp.eq.s32.totalorder %s16, 0
      %p36 = por %p34, %p35
      %p37 = scmp.ne.s32.totalorder %s26, %s29
      %p38 = scmp.eq.s32.totalorder %s21, 3
      %p39 = por %p37, %p38
      %p40 = scmp.ne.s32.totalorder %s29, %s30
      %p41 = scmp.eq.s32.totalorder %s21, 0
      %p42 = por %p40, %p41
      %p43 = scmp.ne.s32.totalorder %s29, %s30
      %p44 = scmp.eq.s32.totalorder %s22, 3
      %p45 = por %p43, %p44
      %p47 = scmp.ne.s32.totalorder %s30, %s46
      %p48 = scmp.eq.s32.totalorder %s22, 0
      %p49 = por %p47, %p48
      %s51 = sadd.s32 %s50, 1
      %p54 = scmp.eq.s32.totalorder %s16, 3
      %p55 = scmp.ne.s32.totalorder %s50, %s52
      %p56 = scmp.eq.s32.totalorder %s16, 0
      %p57 = por %p55, %p56
      %p58 = scmp.ne.s32.totalorder %s50, %s52
      %p59 = scmp.eq.s32.totalorder %s21, 3
      %p60 = por %p58, %p59
      %p61 = scmp.ne.s32.totalorder %s52, %s53
      %p62 = scmp.eq.s32.totalorder %s21, 0
      %p63 = por %p61, %p62
      %p64 = scmp.ne.s32.totalorder %s52, %s53
      %p65 = scmp.eq.s32.totalorder %s22, 3
      %p66 = por %p64, %p65
      %p68 = scmp.ne.s32.totalorder %s53, %s67
      %p69 = scmp.eq.s32.totalorder %s22, 0
      %p70 = por %p68, %p69
      %s72 = sadd.s32 %s71, 1
      %p75 = scmp.eq.s32.totalorder %s16, 3
      %p76 = scmp.ne.s32.totalorder %s71, %s73
      %p77 = scmp.eq.s32.totalorder %s16, 0
      %p78 = por %p76, %p77
      %p79 = scmp.ne.s32.totalorder %s71, %s73
      %p80 = scmp.eq.s32.totalorder %s21, 3
      %p81 = por %p79, %p80
      %p82 = scmp.ne.s32.totalorder %s73, %s74
      %p83 = scmp.eq.s32.totalorder %s21, 0
      %p84 = por %p82, %p83
      %p85 = scmp.ne.s32.totalorder %s73, %s74
      %p86 = scmp.eq.s32.totalorder %s22, 3
      %p87 = por %p85, %p86
      %p89 = scmp.ne.s32.totalorder %s74, %s88
      %p90 = scmp.eq.s32.totalorder %s22, 0
      %p91 = por %p89, %p90
      %s93 = sadd.s32 %s92, 1
      %p96 = scmp.eq.s32.totalorder %s16, 3
      %p97 = scmp.ne.s32.totalorder %s92, %s94
      %p98 = scmp.eq.s32.totalorder %s16, 0
      %p99 = por %p97, %p98
      %p100 = scmp.ne.s32.totalorder %s92, %s94
      %p101 = scmp.eq.s32.totalorder %s21, 3
      %p102 = por %p100, %p101
      %p103 = scmp.ne.s32.totalorder %s94, %s95
      %p104 = scmp.eq.s32.totalorder %s21, 0
      %p105 = por %p103, %p104
      %p106 = scmp.ne.s32.totalorder %s94, %s95
      %p107 = scmp.eq.s32.totalorder %s22, 3
      %p108 = por %p106, %p107
      %p110 = scmp.ne.s32.totalorder %s95, %s109
      %p111 = scmp.eq.s32.totalorder %s22, 0
      %p112 = por %p110, %p111
      %s114 = sadd.s32 %s113, 1
      %p117 = scmp.eq.s32.totalorder %s16, 3
      %p118 = scmp.ne.s32.totalorder %s113, %s115
      %p119 = scmp.eq.s32.totalorder %s16, 0
      %p120 = por %p118, %p119
      %p121 = scmp.ne.s32.totalorder %s113, %s115
      %p122 = scmp.eq.s32.totalorder %s21, 3
      %p123 = por %p121, %p122
      %p124 = scmp.ne.s32.totalorder %s115, %s116
      %p125 = scmp.eq.s32.totalorder %s21, 0
      %p126 = por %p124, %p125
      %p127 = scmp.ne.s32.totalorder %s115, %s116
      %p128 = scmp.eq.s32.totalorder %s22, 3
      %p129 = por %p127, %p128
      %p131 = scmp.ne.s32.totalorder %s116, %s130
      %p132 = scmp.eq.s32.totalorder %s22, 0
      %p133 = por %p131, %p132
      %s135 = sadd.s32 %s134, 1
      %p138 = scmp.eq.s32.totalorder %s16, 3
      %p139 = scmp.ne.s32.totalorder %s134, %s136
      %p140 = scmp.eq.s32.totalorder %s16, 0
      %p141 = por %p139, %p140
      %p142 = scmp.ne.s32.totalorder %s134, %s136
      %p143 = scmp.eq.s32.totalorder %s21, 3
      %p144 = por %p142, %p143
      %p145 = scmp.ne.s32.totalorder %s136, %s137
      %p146 = scmp.eq.s32.totalorder %s21, 0
      %p147 = por %p145, %p146
      %p148 = scmp.ne.s32.totalorder %s136, %s137
      %p149 = scmp.eq.s32.totalorder %s22, 3
      %p150 = por %p148, %p149
      %p152 = scmp.ne.s32.totalorder %s137, %s151
      %p153 = scmp.eq.s32.totalorder %s22, 0
      %p154 = por %p152, %p153
      %s156 = sadd.s32 %s155, 1
      %p159 = scmp.eq.s32.totalorder %s16, 3
      %p160 = scmp.ne.s32.totalorder %s155, %s157
      %p161 = scmp.eq.s32.totalorder %s16, 0
      %p162 = por %p160, %p161
      %p163 = scmp.ne.s32.totalorder %s155, %s157
      %p164 = scmp.eq.s32.totalorder %s21, 3
      %p165 = por %p163, %p164
      %p166 = scmp.ne.s32.totalorder %s157, %s158
      %p167 = scmp.eq.s32.totalorder %s21, 0
      %p168 = por %p166, %p167
      %p169 = scmp.ne.s32.totalorder %s157, %s158
      %p170 = scmp.eq.s32.totalorder %s22, 3
      %p171 = por %p169, %p170
      %p173 = scmp.ne.s32.totalorder %s158, %s172
      %p174 = scmp.eq.s32.totalorder %s22, 0
      %p175 = por %p173, %p174
      %s176 = ssub.s32 %s16, %s23
      %p177 = scmp.eq.s32.totalorder %s176, 0
      %s179 = sadd.s32 %s178, 1
      %s180 = scalar_select %p177, %s178, %s179
      %p183 = pneg %p177
      %p184 = scmp.eq.s32.totalorder %s16, 3
      %p185 = por %p183, %p184
      %p186 = scmp.ne.s32.totalorder %s178, %s181
      %p187 = scmp.eq.s32.totalorder %s16, 0
      %p188 = por %p186, %p187
      %p189 = scmp.ne.s32.totalorder %s178, %s181
      %p190 = scmp.eq.s32.totalorder %s21, 3
      %p191 = por %p189, %p190
      %p192 = scmp.ne.s32.totalorder %s181, %s182
      %p193 = scmp.eq.s32.totalorder %s21, 0
      %p194 = por %p192, %p193
      %p195 = scmp.ne.s32.totalorder %s181, %s182
      %p196 = scmp.eq.s32.totalorder %s22, 3
      %p197 = por %p195, %p196
      %p199 = scmp.ne.s32.totalorder %s182, %s198
      %p200 = scmp.eq.s32.totalorder %s22, 0
      %p201 = por %p199, %p200
      %p202 = scmp.le.s32.totalorder 1, %s16
      %p203 = scmp.lt.s32.totalorder %s16, 5
      %p204 = pnand %p202, %p203
      %p205 = pneg %p204
      // Predicated region
      $region9: #{_lambda_.1} parent=5 // pred_check
        _
      $region10: #{_lambda_.1} parent=5 // pred_check_branch
        %207 = sbr.rel (%p204) target = $region12
      $region11: #{_lambda_.1} parent=5 // pred_region
        %s208 = ssub.s32 %s16, 1
        // Predicated region
        $region13: #{_lambda_.1} parent=11 // pred_check
          %p209 = pneg %p63
        $region14: #{_lambda_.1} parent=11 // pred_check_branch
          %211 = sbr.rel (%p209) target = $region16
        $region15: #{_lambda_.1} parent=11 // pred_region
          _
        $region16: #{_lambda_.1} parent=11 // pred_fallthru
          _
        // Predicated region
        $region17: #{_lambda_.1} parent=11 // pred_check
          %p212 = pneg %p84
        $region18: #{_lambda_.1} parent=11 // pred_check_branch
          %214 = sbr.rel (%p212) target = $region20
        $region19: #{_lambda_.1} parent=11 // pred_region
          _
        $region20: #{_lambda_.1} parent=11 // pred_fallthru
          _
        // Predicated region
        $region21: #{_lambda_.1} parent=11 // pred_check
          %p215 = pneg %p105
        $region22: #{_lambda_.1} parent=11 // pred_check_branch
          %217 = sbr.rel (%p215) target = $region24
        $region23: #{_lambda_.1} parent=11 // pred_region
          _
        $region24: #{_lambda_.1} parent=11 // pred_fallthru
          _
        // Predicated region
        $region25: #{_lambda_.1} parent=11 // pred_check
          %p218 = pneg %p126
        $region26: #{_lambda_.1} parent=11 // pred_check_branch
          %220 = sbr.rel (%p218) target = $region28
        $region27: #{_lambda_.1} parent=11 // pred_region
          _
        $region28: #{_lambda_.1} parent=11 // pred_fallthru
          _
        // Predicated region
        $region29: #{_lambda_.1} parent=11 // pred_check
          %p221 = pneg %p147
        $region30: #{_lambda_.1} parent=11 // pred_check_branch
          %223 = sbr.rel (%p221) target = $region32
        $region31: #{_lambda_.1} parent=11 // pred_region
          _
        $region32: #{_lambda_.1} parent=11 // pred_fallthru
          _
        // Predicated region
        $region33: #{_lambda_.1} parent=11 // pred_check
          %p224 = pneg %p168
        $region34: #{_lambda_.1} parent=11 // pred_check_branch
          %226 = sbr.rel (%p224) target = $region36
        $region35: #{_lambda_.1} parent=11 // pred_region
          _
        $region36: #{_lambda_.1} parent=11 // pred_fallthru
          _
      $region12: #{_lambda_.1} parent=5 // pred_fallthru
        _
      %p227 = scmp.lt.s32.totalorder %s16, 4
      // Predicated region
      $region37: #{_lambda_.1} parent=5 // pred_check
        %p228 = pneg %p227
      $region38: #{_lambda_.1} parent=5 // pred_check_branch
        %230 = sbr.rel (%p228) target = $region40
      $region39: #{_lambda_.1} parent=5 // pred_region
        // Predicated region
        $region41: #{_lambda_.1} parent=39 // pred_check
          %p231 = pneg %p36
        $region42: #{_lambda_.1} parent=39 // pred_check_branch
          %233 = sbr.rel (%p231) target = $region44
        $region43: #{_lambda_.1} parent=39 // pred_region
          %s234 = smul.u32 16, %s16
          %p235 = scmp.lt.s32.totalorder %s234, 63
          %s236 = scalar_select %p235, %s234, 63
          %s237 = smul.addr %s236, 8
          %s238 = scalar_lea.vmem %s0, %s237
          %s239 = smul.u32 16, %s16
        $region44: #{_lambda_.1} parent=39 // pred_fallthru
          _
      $region40: #{_lambda_.1} parent=5 // pred_fallthru
        _
      %p240 = scmp.le.s32.totalorder 1, %s16
      %p241 = scmp.lt.s32.totalorder %s16, 5
      %p242 = pnand %p240, %p241
      %p243 = pneg %p242
      // Predicated region
      $region45: #{_lambda_.1} parent=5 // pred_check
        _
      $region46: #{_lambda_.1} parent=5 // pred_check_branch
        %245 = sbr.rel (%p242) target = $region48
      $region47: #{_lambda_.1} parent=5 // pred_region
        %s246 = ssub.s32 %s16, 1
        %s247 = smul.u32 16, %s21
        %p248 = scmp.lt.s32.totalorder %s247, 63
        %s249 = scalar_select %p248, %s247, 63
        %s250 = smul.addr %s249, 8
        %s251 = scalar_lea.vmem %s0, %s250
        %p252 = pneg %p42
        %p253 = pneg %p39
        %p254 = pneg %p63
        %p255 = pneg %p60
        %p256 = pneg %p84
        %p257 = pneg %p81
        %p258 = pneg %p105
        %p259 = pneg %p102
        %p260 = pneg %p126
        %p261 = pneg %p123
        %p262 = pneg %p147
        %p263 = pneg %p144
        %p264 = pneg %p168
        %p265 = pneg %p165
        %p266 = pneg %p194
        %p267 = pneg %p191
        %s268 = sand.u32 %s181, 1
        %s269 = scalar_lea.sflag [#allocation3], %s268
        %s270 = sand.u32 %s181, 1
        %s271 = smul.addr %s270, 8
        %s272 = scalar_lea.vmem [#allocation2], %s271
        %s273 = smul.u32 16, %s21
        %p274 = scmp.lt.s32.totalorder %s273, 63
        %s275 = scalar_select %p274, %s273, 63
        %s276 = smul.addr %s275, 8
        %s277 = scalar_lea.vmem %s0, %s276
        %s278 = smul.u32 16, %s21
        %v280 = vld [vmem:[%s277] sm:$0xff]
        %v281 = vld [vmem:[%s277 + $0x8] sm:$0xff]
        %v282 = vld [vmem:[%s277 + $0x10] sm:$0xff]
        %v283 = vld [vmem:[%s277 + $0x18] sm:$0xff]
        %v284 = vld [vmem:[%s277 + $0x20] sm:$0xff]
        %v285 = vld [vmem:[%s277 + $0x28] sm:$0xff]
        %v286 = vld [vmem:[%s277 + $0x30] sm:$0xff]
        %v287 = vld [vmem:[%s277 + $0x38] sm:$0xff]
        %v288 = vld [vmem:[%s277 + $0x40] sm:$0xff]
        %v289 = vld [vmem:[%s277 + $0x48] sm:$0xff]
        %v290 = vld [vmem:[%s277 + $0x50] sm:$0xff]
        %v291 = vld [vmem:[%s277 + $0x58] sm:$0xff]
        %v292 = vld [vmem:[%s277 + $0x60] sm:$0xff]
        %v293 = vld [vmem:[%s277 + $0x68] sm:$0xff]
        %v294 = vld [vmem:[%s277 + $0x70] sm:$0xff]
        %v295 = vld [vmem:[%s277 + $0x78] sm:$0xff]
        %v296 = vpack.c.bf16 %v281, %v280
        %v297 = vpack.c.bf16 %v283, %v282
        %v298 = vpack.c.bf16 %v285, %v284
        %v299 = vpack.c.bf16 %v287, %v286
        %v300 = vpack.c.bf16 %v289, %v288
        %v301 = vpack.c.bf16 %v291, %v290
        %v302 = vpack.c.bf16 %v293, %v292
        %v303 = vpack.c.bf16 %v295, %v294
        %v304 = vld [vmem:[%s1] sm:$0xff]
        %v305 = vld [vmem:[%s1 + $0x8] sm:$0xff]
        %v306 = vpack.c.bf16 %v305, %v304
        %v307 = vld [vmem:[%s2] sm:$0x1]
        %v309 = vperm.slane %v307, 0
        %vm311 = vcmask 130048
        %v313 = vsel %vm311, %v296, 0
        %v316 = vsel %vm311, %v297, 0
        %v319 = vsel %vm311, %v298, 0
        %v322 = vsel %vm311, %v299, 0
        %v325 = vsel %vm311, %v300, 0
        %v328 = vsel %vm311, %v301, 0
        %v331 = vsel %vm311, %v302, 0
        %v334 = vsel %vm311, %v303, 0
        %336 = vmatpush.bf16.msra.mxu0 0
        %337 = vmatpush.bf16.msra.mxu0 0
        %338 = vmatpush.bf16.msra.mxu0 0
        %339 = vmatpush.bf16.msra.mxu0 0
        %340 = vmatpush.bf16.msra.mxu0 0
        %341 = vmatpush.bf16.msra.mxu0 0
        %342 = vmatpush.bf16.msra.mxu0 0
        %343 = vmatpush.bf16.msra.mxu0 %v306
        %344 = vmatmul.bf16.gmra.mxu0 %v313
        %v345 = vpop.f32.mrf.mxu0
        %v346 = vadd.f32 %v309, %v345
        %v347 = vpop.f32.mrf.mxu0
        %v348 = vadd.f32 %v309, %v347
        %349 = vmatmul.bf16.gmra.mxu0 %v316
        %v350 = vpop.f32.mrf.mxu0
        %v351 = vadd.f32 %v309, %v350
        %v352 = vpop.f32.mrf.mxu0
        %v353 = vadd.f32 %v309, %v352
        %354 = vmatmul.bf16.gmra.mxu0 %v319
        %v355 = vpop.f32.mrf.mxu0
        %v356 = vadd.f32 %v309, %v355
        %v357 = vpop.f32.mrf.mxu0
        %v358 = vadd.f32 %v309, %v357
        %359 = vmatmul.bf16.gmra.mxu0 %v322
        %v360 = vpop.f32.mrf.mxu0
        %v361 = vadd.f32 %v309, %v360
        %v362 = vpop.f32.mrf.mxu0
        %v363 = vadd.f32 %v309, %v362
        %364 = vmatmul.bf16.gmra.mxu0 %v325
        %v365 = vpop.f32.mrf.mxu0
        %v366 = vadd.f32 %v309, %v365
        %v367 = vpop.f32.mrf.mxu0
        %v368 = vadd.f32 %v309, %v367
        %369 = vmatmul.bf16.gmra.mxu0 %v328
        %v370 = vpop.f32.mrf.mxu0
        %v371 = vadd.f32 %v309, %v370
        %v372 = vpop.f32.mrf.mxu0
        %v373 = vadd.f32 %v309, %v372
        %374 = vmatmul.bf16.gmra.mxu0 %v331
        %v375 = vpop.f32.mrf.mxu0
        %v376 = vadd.f32 %v309, %v375
        %v377 = vpop.f32.mrf.mxu0
        %v378 = vadd.f32 %v309, %v377
        %379 = vmatmul.bf16.gmra.mxu0 %v334
        %v380 = vpop.f32.mrf.mxu0
        %v381 = vadd.f32 %v309, %v380
        %v382 = vpop.f32.mrf.mxu0
        %v383 = vadd.f32 %v309, %v382
        %384 = vdwg.mxu0
        %v385 = vxor.u32 %v346, 2147483648
        %v386 = vxor.u32 %v348, 2147483648
        %v387 = vxor.u32 %v351, 2147483648
        %v388 = vxor.u32 %v353, 2147483648
        %v389 = vxor.u32 %v356, 2147483648
        %v390 = vxor.u32 %v358, 2147483648
        %v391 = vxor.u32 %v361, 2147483648
        %v392 = vxor.u32 %v363, 2147483648
        %v393 = vxor.u32 %v366, 2147483648
        %v394 = vxor.u32 %v368, 2147483648
        %v395 = vxor.u32 %v371, 2147483648
        %v396 = vxor.u32 %v373, 2147483648
        %v397 = vxor.u32 %v376, 2147483648
        %v398 = vxor.u32 %v378, 2147483648
        %v399 = vxor.u32 %v381, 2147483648
        %v400 = vxor.u32 %v383, 2147483648
        %v401 = vmul.f32 %v385, 1.442695
        %v402 = vpow.pop %v401
        %v403 = vmul.f32 %v386, 1.442695
        %v404 = vpow.pop %v403
        %v405 = vmul.f32 %v387, 1.442695
        %v406 = vpow.pop %v405
        %v407 = vmul.f32 %v388, 1.442695
        %v408 = vpow.pop %v407
        %v409 = vmul.f32 %v389, 1.442695
        %v410 = vpow.pop %v409
        %v411 = vmul.f32 %v390, 1.442695
        %v412 = vpow.pop %v411
        %v413 = vmul.f32 %v391, 1.442695
        %v414 = vpow.pop %v413
        %v415 = vmul.f32 %v392, 1.442695
        %v416 = vpow.pop %v415
        %v417 = vmul.f32 %v393, 1.442695
        %v418 = vpow.pop %v417
        %v419 = vmul.f32 %v394, 1.442695
        %v420 = vpow.pop %v419
        %v421 = vmul.f32 %v395, 1.442695
        %v422 = vpow.pop %v421
        %v423 = vmul.f32 %v396, 1.442695
        %v424 = vpow.pop %v423
        %v425 = vmul.f32 %v397, 1.442695
        %v426 = vpow.pop %v425
        %v427 = vmul.f32 %v398, 1.442695
        %v428 = vpow.pop %v427
        %v429 = vmul.f32 %v399, 1.442695
        %v430 = vpow.pop %v429
        %v431 = vmul.f32 %v400, 1.442695
        %v432 = vpow.pop %v431
        %v433 = vadd.f32 %v402, 1.0
        %v434 = vadd.f32 %v404, 1.0
        %v435 = vadd.f32 %v406, 1.0
        %v436 = vadd.f32 %v408, 1.0
        %v437 = vadd.f32 %v410, 1.0
        %v438 = vadd.f32 %v412, 1.0
        %v439 = vadd.f32 %v414, 1.0
        %v440 = vadd.f32 %v416, 1.0
        %v441 = vadd.f32 %v418, 1.0
        %v442 = vadd.f32 %v420, 1.0
        %v443 = vadd.f32 %v422, 1.0
        %v444 = vadd.f32 %v424, 1.0
        %v445 = vadd.f32 %v426, 1.0
        %v446 = vadd.f32 %v428, 1.0
        %v447 = vadd.f32 %v430, 1.0
        %v448 = vadd.f32 %v432, 1.0
        %v449 = vrcp.pop %v433
        %v450 = vmul.f32 %v433, %v449
        %v451 = vsub.f32 1.0, %v450
        %v452 = vmul.f32 %v449, %v451
        %v453 = vadd.f32 %v449, %v452
        %vm454 = vweird.f32 %v433
        %vm455 = vweird.f32 %v449
        %vm456 = vmor %vm454, %vm455
        %v457 = vsel %vm456, %v449, %v453
        %v458 = vand.u32 2147483647, %v433
        %vm459 = vcmp.eq.f32.partialorder %v458, 8.507059e+37
        %v460 = vand.u32 %v433, 2147483648
        %v461 = vor.u32 1.1754944e-38, %v460
        %v462 = vsel %vm459, %v461, %v457
        %v463 = vmul.f32 1.0, %v462
        %v464 = vrcp.pop %v434
        %v465 = vmul.f32 %v434, %v464
        %v466 = vsub.f32 1.0, %v465
        %v467 = vmul.f32 %v464, %v466
        %v468 = vadd.f32 %v464, %v467
        %vm469 = vweird.f32 %v434
        %vm470 = vweird.f32 %v464
        %vm471 = vmor %vm469, %vm470
        %v472 = vsel %vm471, %v464, %v468
        %v473 = vand.u32 2147483647, %v434
        %vm474 = vcmp.eq.f32.partialorder %v473, 8.507059e+37
        %v475 = vand.u32 %v434, 2147483648
        %v476 = vor.u32 1.1754944e-38, %v475
        %v477 = vsel %vm474, %v476, %v472
        %v478 = vmul.f32 1.0, %v477
        %v479 = vrcp.pop %v435
        %v480 = vmul.f32 %v435, %v479
        %v481 = vsub.f32 1.0, %v480
        %v482 = vmul.f32 %v479, %v481
        %v483 = vadd.f32 %v479, %v482
        %vm484 = vweird.f32 %v435
        %vm485 = vweird.f32 %v479
        %vm486 = vmor %vm484, %vm485
        %v487 = vsel %vm486, %v479, %v483
        %v488 = vand.u32 2147483647, %v435
        %vm489 = vcmp.eq.f32.partialorder %v488, 8.507059e+37
        %v490 = vand.u32 %v435, 2147483648
        %v491 = vor.u32 1.1754944e-38, %v490
        %v492 = vsel %vm489, %v491, %v487
        %v493 = vmul.f32 1.0, %v492
        %v494 = vrcp.pop %v436
        %v495 = vmul.f32 %v436, %v494
        %v496 = vsub.f32 1.0, %v495
        %v497 = vmul.f32 %v494, %v496
        %v498 = vadd.f32 %v494, %v497
        %vm499 = vweird.f32 %v436
        %vm500 = vweird.f32 %v494
        %vm501 = vmor %vm499, %vm500
        %v502 = vsel %vm501, %v494, %v498
        %v503 = vand.u32 2147483647, %v436
        %vm504 = vcmp.eq.f32.partialorder %v503, 8.507059e+37
        %v505 = vand.u32 %v436, 2147483648
        %v506 = vor.u32 1.1754944e-38, %v505
        %v507 = vsel %vm504, %v506, %v502
        %v508 = vmul.f32 1.0, %v507
        %v509 = vrcp.pop %v437
        %v510 = vmul.f32 %v437, %v509
        %v511 = vsub.f32 1.0, %v510
        %v512 = vmul.f32 %v509, %v511
        %v513 = vadd.f32 %v509, %v512
        %vm514 = vweird.f32 %v437
        %vm515 = vweird.f32 %v509
        %vm516 = vmor %vm514, %vm515
        %v517 = vsel %vm516, %v509, %v513
        %v518 = vand.u32 2147483647, %v437
        %vm519 = vcmp.eq.f32.partialorder %v518, 8.507059e+37
        %v520 = vand.u32 %v437, 2147483648
        %v521 = vor.u32 1.1754944e-38, %v520
        %v522 = vsel %vm519, %v521, %v517
        %v523 = vmul.f32 1.0, %v522
        %v524 = vrcp.pop %v438
        %v525 = vmul.f32 %v438, %v524
        %v526 = vsub.f32 1.0, %v525
        %v527 = vmul.f32 %v524, %v526
        %v528 = vadd.f32 %v524, %v527
        %vm529 = vweird.f32 %v438
        %vm530 = vweird.f32 %v524
        %vm531 = vmor %vm529, %vm530
        %v532 = vsel %vm531, %v524, %v528
        %v533 = vand.u32 2147483647, %v438
        %vm534 = vcmp.eq.f32.partialorder %v533, 8.507059e+37
        %v535 = vand.u32 %v438, 2147483648
        %v536 = vor.u32 1.1754944e-38, %v535
        %v537 = vsel %vm534, %v536, %v532
        %v538 = vmul.f32 1.0, %v537
        %v539 = vrcp.pop %v439
        %v540 = vmul.f32 %v439, %v539
        %v541 = vsub.f32 1.0, %v540
        %v542 = vmul.f32 %v539, %v541
        %v543 = vadd.f32 %v539, %v542
        %vm544 = vweird.f32 %v439
        %vm545 = vweird.f32 %v539
        %vm546 = vmor %vm544, %vm545
        %v547 = vsel %vm546, %v539, %v543
        %v548 = vand.u32 2147483647, %v439
        %vm549 = vcmp.eq.f32.partialorder %v548, 8.507059e+37
        %v550 = vand.u32 %v439, 2147483648
        %v551 = vor.u32 1.1754944e-38, %v550
        %v552 = vsel %vm549, %v551, %v547
        %v553 = vmul.f32 1.0, %v552
        %v554 = vrcp.pop %v440
        %v555 = vmul.f32 %v440, %v554
        %v556 = vsub.f32 1.0, %v555
        %v557 = vmul.f32 %v554, %v556
        %v558 = vadd.f32 %v554, %v557
        %vm559 = vweird.f32 %v440
        %vm560 = vweird.f32 %v554
        %vm561 = vmor %vm559, %vm560
        %v562 = vsel %vm561, %v554, %v558
        %v563 = vand.u32 2147483647, %v440
        %vm564 = vcmp.eq.f32.partialorder %v563, 8.507059e+37
        %v565 = vand.u32 %v440, 2147483648
        %v566 = vor.u32 1.1754944e-38, %v565
        %v567 = vsel %vm564, %v566, %v562
        %v568 = vmul.f32 1.0, %v567
        %v569 = vrcp.pop %v441
        %v570 = vmul.f32 %v441, %v569
        %v571 = vsub.f32 1.0, %v570
        %v572 = vmul.f32 %v569, %v571
        %v573 = vadd.f32 %v569, %v572
        %vm574 = vweird.f32 %v441
        %vm575 = vweird.f32 %v569
        %vm576 = vmor %vm574, %vm575
        %v577 = vsel %vm576, %v569, %v573
        %v578 = vand.u32 2147483647, %v441
        %vm579 = vcmp.eq.f32.partialorder %v578, 8.507059e+37
        %v580 = vand.u32 %v441, 2147483648
        %v581 = vor.u32 1.1754944e-38, %v580
        %v582 = vsel %vm579, %v581, %v577
        %v583 = vmul.f32 1.0, %v582
        %v584 = vrcp.pop %v442
        %v585 = vmul.f32 %v442, %v584
        %v586 = vsub.f32 1.0, %v585
        %v587 = vmul.f32 %v584, %v586
        %v588 = vadd.f32 %v584, %v587
        %vm589 = vweird.f32 %v442
        %vm590 = vweird.f32 %v584
        %vm591 = vmor %vm589, %vm590
        %v592 = vsel %vm591, %v584, %v588
        %v593 = vand.u32 2147483647, %v442
        %vm594 = vcmp.eq.f32.partialorder %v593, 8.507059e+37
        %v595 = vand.u32 %v442, 2147483648
        %v596 = vor.u32 1.1754944e-38, %v595
        %v597 = vsel %vm594, %v596, %v592
        %v598 = vmul.f32 1.0, %v597
        %v599 = vrcp.pop %v443
        %v600 = vmul.f32 %v443, %v599
        %v601 = vsub.f32 1.0, %v600
        %v602 = vmul.f32 %v599, %v601
        %v603 = vadd.f32 %v599, %v602
        %vm604 = vweird.f32 %v443
        %vm605 = vweird.f32 %v599
        %vm606 = vmor %vm604, %vm605
        %v607 = vsel %vm606, %v599, %v603
        %v608 = vand.u32 2147483647, %v443
        %vm609 = vcmp.eq.f32.partialorder %v608, 8.507059e+37
        %v610 = vand.u32 %v443, 2147483648
        %v611 = vor.u32 1.1754944e-38, %v610
        %v612 = vsel %vm609, %v611, %v607
        %v613 = vmul.f32 1.0, %v612
        %v614 = vrcp.pop %v444
        %v615 = vmul.f32 %v444, %v614
        %v616 = vsub.f32 1.0, %v615
        %v617 = vmul.f32 %v614, %v616
        %v618 = vadd.f32 %v614, %v617
        %vm619 = vweird.f32 %v444
        %vm620 = vweird.f32 %v614
        %vm621 = vmor %vm619, %vm620
        %v622 = vsel %vm621, %v614, %v618
        %v623 = vand.u32 2147483647, %v444
        %vm624 = vcmp.eq.f32.partialorder %v623, 8.507059e+37
        %v625 = vand.u32 %v444, 2147483648
        %v626 = vor.u32 1.1754944e-38, %v625
        %v627 = vsel %vm624, %v626, %v622
        %v628 = vmul.f32 1.0, %v627
        %v629 = vrcp.pop %v445
        %v630 = vmul.f32 %v445, %v629
        %v631 = vsub.f32 1.0, %v630
        %v632 = vmul.f32 %v629, %v631
        %v633 = vadd.f32 %v629, %v632
        %vm634 = vweird.f32 %v445
        %vm635 = vweird.f32 %v629
        %vm636 = vmor %vm634, %vm635
        %v637 = vsel %vm636, %v629, %v633
        %v638 = vand.u32 2147483647, %v445
        %vm639 = vcmp.eq.f32.partialorder %v638, 8.507059e+37
        %v640 = vand.u32 %v445, 2147483648
        %v641 = vor.u32 1.1754944e-38, %v640
        %v642 = vsel %vm639, %v641, %v637
        %v643 = vmul.f32 1.0, %v642
        %v644 = vrcp.pop %v446
        %v645 = vmul.f32 %v446, %v644
        %v646 = vsub.f32 1.0, %v645
        %v647 = vmul.f32 %v644, %v646
        %v648 = vadd.f32 %v644, %v647
        %vm649 = vweird.f32 %v446
        %vm650 = vweird.f32 %v644
        %vm651 = vmor %vm649, %vm650
        %v652 = vsel %vm651, %v644, %v648
        %v653 = vand.u32 2147483647, %v446
        %vm654 = vcmp.eq.f32.partialorder %v653, 8.507059e+37
        %v655 = vand.u32 %v446, 2147483648
        %v656 = vor.u32 1.1754944e-38, %v655
        %v657 = vsel %vm654, %v656, %v652
        %v658 = vmul.f32 1.0, %v657
        %v659 = vrcp.pop %v447
        %v660 = vmul.f32 %v447, %v659
        %v661 = vsub.f32 1.0, %v660
        %v662 = vmul.f32 %v659, %v661
        %v663 = vadd.f32 %v659, %v662
        %vm664 = vweird.f32 %v447
        %vm665 = vweird.f32 %v659
        %vm666 = vmor %vm664, %vm665
        %v667 = vsel %vm666, %v659, %v663
        %v668 = vand.u32 2147483647, %v447
        %vm669 = vcmp.eq.f32.partialorder %v668, 8.507059e+37
        %v670 = vand.u32 %v447, 2147483648
        %v671 = vor.u32 1.1754944e-38, %v670
        %v672 = vsel %vm669, %v671, %v667
        %v673 = vmul.f32 1.0, %v672
        %v674 = vrcp.pop %v448
        %v675 = vmul.f32 %v448, %v674
        %v676 = vsub.f32 1.0, %v675
        %v677 = vmul.f32 %v674, %v676
        %v678 = vadd.f32 %v674, %v677
        %vm679 = vweird.f32 %v448
        %vm680 = vweird.f32 %v674
        %vm681 = vmor %vm679, %vm680
        %v682 = vsel %vm681, %v674, %v678
        %v683 = vand.u32 2147483647, %v448
        %vm684 = vcmp.eq.f32.partialorder %v683, 8.507059e+37
        %v685 = vand.u32 %v448, 2147483648
        %v686 = vor.u32 1.1754944e-38, %v685
        %v687 = vsel %vm684, %v686, %v682
        %v688 = vmul.f32 1.0, %v687
        %v689 = vpack.c.bf16 %v478, %v463
        %v690 = vpack.c.bf16 %v508, %v493
        %v691 = vpack.c.bf16 %v538, %v523
        %v692 = vpack.c.bf16 %v568, %v553
        %v693 = vpack.c.bf16 %v598, %v583
        %v694 = vpack.c.bf16 %v628, %v613
        %v695 = vpack.c.bf16 %v658, %v643
        %v696 = vpack.c.bf16 %v688, %v673
        %v697 = vld [vmem:[%s3] sm:$0xff]
        %v698 = vld [vmem:[%s3 + $0x8] sm:$0xff]
        %v699 = vld [vmem:[%s3 + $0x10] sm:$0xff]
        %v700 = vld [vmem:[%s3 + $0x18] sm:$0xff]
        %v701 = vpack.c.bf16 %v698, %v697
        %v702 = vpack.c.bf16 %v700, %v699
        %v703 = vld [vmem:[%s4] sm:$0x1]
        %v705 = vperm.slane %v703, 0
        %vm707 = vcmask 261120
        %v709 = vsel %vm707, %v689, 0
        %v712 = vsel %vm707, %v690, 0
        %v715 = vsel %vm707, %v691, 0
        %v718 = vsel %vm707, %v692, 0
        %v721 = vsel %vm707, %v693, 0
        %v724 = vsel %vm707, %v694, 0
        %v727 = vsel %vm707, %v695, 0
        %v730 = vsel %vm707, %v696, 0
        %732 = vmatpush.bf16.msra.mxu0 0
        %733 = vmatpush.bf16.msra.mxu0 0
        %734 = vmatpush.bf16.msra.mxu0 0
        %735 = vmatpush.bf16.msra.mxu0 0
        %736 = vmatpush.bf16.msra.mxu0 0
        %737 = vmatpush.bf16.msra.mxu0 0
        %738 = vmatpush.bf16.msra.mxu0 %v702
        %739 = vmatpush.bf16.msra.mxu0 %v701
        %740 = vmatmul.bf16.gmra.mxu0 %v709
        %v741 = vpop.f32.mrf.mxu0
        %v742 = vadd.f32 %v705, %v741
        %v743 = vpop.f32.mrf.mxu0
        %v744 = vadd.f32 %v705, %v743
        %745 = vmatmul.bf16.gmra.mxu0 %v712
        %v746 = vpop.f32.mrf.mxu0
        %v747 = vadd.f32 %v705, %v746
        %v748 = vpop.f32.mrf.mxu0
        %v749 = vadd.f32 %v705, %v748
        %750 = vmatmul.bf16.gmra.mxu0 %v715
        %v751 = vpop.f32.mrf.mxu0
        %v752 = vadd.f32 %v705, %v751
        %v753 = vpop.f32.mrf.mxu0
        %v754 = vadd.f32 %v705, %v753
        %755 = vmatmul.bf16.gmra.mxu0 %v718
        %v756 = vpop.f32.mrf.mxu0
        %v757 = vadd.f32 %v705, %v756
        %v758 = vpop.f32.mrf.mxu0
        %v759 = vadd.f32 %v705, %v758
        %760 = vmatmul.bf16.gmra.mxu0 %v721
        %v761 = vpop.f32.mrf.mxu0
        %v762 = vadd.f32 %v705, %v761
        %v763 = vpop.f32.mrf.mxu0
        %v764 = vadd.f32 %v705, %v763
        %765 = vmatmul.bf16.gmra.mxu0 %v724
        %v766 = vpop.f32.mrf.mxu0
        %v767 = vadd.f32 %v705, %v766
        %v768 = vpop.f32.mrf.mxu0
        %v769 = vadd.f32 %v705, %v768
        %770 = vmatmul.bf16.gmra.mxu0 %v727
        %v771 = vpop.f32.mrf.mxu0
        %v772 = vadd.f32 %v705, %v771
        %v773 = vpop.f32.mrf.mxu0
        %v774 = vadd.f32 %v705, %v773
        %775 = vmatmul.bf16.gmra.mxu0 %v730
        %v776 = vpop.f32.mrf.mxu0
        %v777 = vadd.f32 %v705, %v776
        %v778 = vpop.f32.mrf.mxu0
        %v779 = vadd.f32 %v705, %v778
        %780 = vdwg.mxu0
        %v781 = vxor.u32 %v742, 2147483648
        %v782 = vxor.u32 %v744, 2147483648
        %v783 = vxor.u32 %v747, 2147483648
        %v784 = vxor.u32 %v749, 2147483648
        %v785 = vxor.u32 %v752, 2147483648
        %v786 = vxor.u32 %v754, 2147483648
        %v787 = vxor.u32 %v757, 2147483648
        %v788 = vxor.u32 %v759, 2147483648
        %v789 = vxor.u32 %v762, 2147483648
        %v790 = vxor.u32 %v764, 2147483648
        %v791 = vxor.u32 %v767, 2147483648
        %v792 = vxor.u32 %v769, 2147483648
        %v793 = vxor.u32 %v772, 2147483648
        %v794 = vxor.u32 %v774, 2147483648
        %v795 = vxor.u32 %v777, 2147483648
        %v796 = vxor.u32 %v779, 2147483648
        %v797 = vmul.f32 %v781, 1.442695
        %v798 = vpow.pop %v797
        %v799 = vmul.f32 %v782, 1.442695
        %v800 = vpow.pop %v799
        %v801 = vmul.f32 %v783, 1.442695
        %v802 = vpow.pop %v801
        %v803 = vmul.f32 %v784, 1.442695
        %v804 = vpow.pop %v803
        %v805 = vmul.f32 %v785, 1.442695
        %v806 = vpow.pop %v805
        %v807 = vmul.f32 %v786, 1.442695
        %v808 = vpow.pop %v807
        %v809 = vmul.f32 %v787, 1.442695
        %v810 = vpow.pop %v809
        %v811 = vmul.f32 %v788, 1.442695
        %v812 = vpow.pop %v811
        %v813 = vmul.f32 %v789, 1.442695
        %v814 = vpow.pop %v813
        %v815 = vmul.f32 %v790, 1.442695
        %v816 = vpow.pop %v815
        %v817 = vmul.f32 %v791, 1.442695
        %v818 = vpow.pop %v817
        %v819 = vmul.f32 %v792, 1.442695
        %v820 = vpow.pop %v819
        %v821 = vmul.f32 %v793, 1.442695
        %v822 = vpow.pop %v821
        %v823 = vmul.f32 %v794, 1.442695
        %v824 = vpow.pop %v823
        %v825 = vmul.f32 %v795, 1.442695
        %v826 = vpow.pop %v825
        %v827 = vmul.f32 %v796, 1.442695
        %v828 = vpow.pop %v827
        %v829 = vadd.f32 %v798, 1.0
        %v830 = vadd.f32 %v800, 1.0
        %v831 = vadd.f32 %v802, 1.0
        %v832 = vadd.f32 %v804, 1.0
        %v833 = vadd.f32 %v806, 1.0
        %v834 = vadd.f32 %v808, 1.0
        %v835 = vadd.f32 %v810, 1.0
        %v836 = vadd.f32 %v812, 1.0
        %v837 = vadd.f32 %v814, 1.0
        %v838 = vadd.f32 %v816, 1.0
        %v839 = vadd.f32 %v818, 1.0
        %v840 = vadd.f32 %v820, 1.0
        %v841 = vadd.f32 %v822, 1.0
        %v842 = vadd.f32 %v824, 1.0
        %v843 = vadd.f32 %v826, 1.0
        %v844 = vadd.f32 %v828, 1.0
        %v845 = vrcp.pop %v829
        %v846 = vmul.f32 %v829, %v845
        %v847 = vsub.f32 1.0, %v846
        %v848 = vmul.f32 %v845, %v847
        %v849 = vadd.f32 %v845, %v848
        %vm850 = vweird.f32 %v829
        %vm851 = vweird.f32 %v845
        %vm852 = vmor %vm850, %vm851
        %v853 = vsel %vm852, %v845, %v849
        %v854 = vand.u32 2147483647, %v829
        %vm855 = vcmp.eq.f32.partialorder %v854, 8.507059e+37
        %v856 = vand.u32 %v829, 2147483648
        %v857 = vor.u32 1.1754944e-38, %v856
        %v858 = vsel %vm855, %v857, %v853
        %v859 = vmul.f32 1.0, %v858
        %v860 = vrcp.pop %v830
        %v861 = vmul.f32 %v830, %v860
        %v862 = vsub.f32 1.0, %v861
        %v863 = vmul.f32 %v860, %v862
        %v864 = vadd.f32 %v860, %v863
        %vm865 = vweird.f32 %v830
        %vm866 = vweird.f32 %v860
        %vm867 = vmor %vm865, %vm866
        %v868 = vsel %vm867, %v860, %v864
        %v869 = vand.u32 2147483647, %v830
        %vm870 = vcmp.eq.f32.partialorder %v869, 8.507059e+37
        %v871 = vand.u32 %v830, 2147483648
        %v872 = vor.u32 1.1754944e-38, %v871
        %v873 = vsel %vm870, %v872, %v868
        %v874 = vmul.f32 1.0, %v873
        %v875 = vrcp.pop %v831
        %v876 = vmul.f32 %v831, %v875
        %v877 = vsub.f32 1.0, %v876
        %v878 = vmul.f32 %v875, %v877
        %v879 = vadd.f32 %v875, %v878
        %vm880 = vweird.f32 %v831
        %vm881 = vweird.f32 %v875
        %vm882 = vmor %vm880, %vm881
        %v883 = vsel %vm882, %v875, %v879
        %v884 = vand.u32 2147483647, %v831
        %vm885 = vcmp.eq.f32.partialorder %v884, 8.507059e+37
        %v886 = vand.u32 %v831, 2147483648
        %v887 = vor.u32 1.1754944e-38, %v886
        %v888 = vsel %vm885, %v887, %v883
        %v889 = vmul.f32 1.0, %v888
        %v890 = vrcp.pop %v832
        %v891 = vmul.f32 %v832, %v890
        %v892 = vsub.f32 1.0, %v891
        %v893 = vmul.f32 %v890, %v892
        %v894 = vadd.f32 %v890, %v893
        %vm895 = vweird.f32 %v832
        %vm896 = vweird.f32 %v890
        %vm897 = vmor %vm895, %vm896
        %v898 = vsel %vm897, %v890, %v894
        %v899 = vand.u32 2147483647, %v832
        %vm900 = vcmp.eq.f32.partialorder %v899, 8.507059e+37
        %v901 = vand.u32 %v832, 2147483648
        %v902 = vor.u32 1.1754944e-38, %v901
        %v903 = vsel %vm900, %v902, %v898
        %v904 = vmul.f32 1.0, %v903
        %v905 = vrcp.pop %v833
        %v906 = vmul.f32 %v833, %v905
        %v907 = vsub.f32 1.0, %v906
        %v908 = vmul.f32 %v905, %v907
        %v909 = vadd.f32 %v905, %v908
        %vm910 = vweird.f32 %v833
        %vm911 = vweird.f32 %v905
        %vm912 = vmor %vm910, %vm911
        %v913 = vsel %vm912, %v905, %v909
        %v914 = vand.u32 2147483647, %v833
        %vm915 = vcmp.eq.f32.partialorder %v914, 8.507059e+37
        %v916 = vand.u32 %v833, 2147483648
        %v917 = vor.u32 1.1754944e-38, %v916
        %v918 = vsel %vm915, %v917, %v913
        %v919 = vmul.f32 1.0, %v918
        %v920 = vrcp.pop %v834
        %v921 = vmul.f32 %v834, %v920
        %v922 = vsub.f32 1.0, %v921
        %v923 = vmul.f32 %v920, %v922
        %v924 = vadd.f32 %v920, %v923
        %vm925 = vweird.f32 %v834
        %vm926 = vweird.f32 %v920
        %vm927 = vmor %vm925, %vm926
        %v928 = vsel %vm927, %v920, %v924
        %v929 = vand.u32 2147483647, %v834
        %vm930 = vcmp.eq.f32.partialorder %v929, 8.507059e+37
        %v931 = vand.u32 %v834, 2147483648
        %v932 = vor.u32 1.1754944e-38, %v931
        %v933 = vsel %vm930, %v932, %v928
        %v934 = vmul.f32 1.0, %v933
        %v935 = vrcp.pop %v835
        %v936 = vmul.f32 %v835, %v935
        %v937 = vsub.f32 1.0, %v936
        %v938 = vmul.f32 %v935, %v937
        %v939 = vadd.f32 %v935, %v938
        %vm940 = vweird.f32 %v835
        %vm941 = vweird.f32 %v935
        %vm942 = vmor %vm940, %vm941
        %v943 = vsel %vm942, %v935, %v939
        %v944 = vand.u32 2147483647, %v835
        %vm945 = vcmp.eq.f32.partialorder %v944, 8.507059e+37
        %v946 = vand.u32 %v835, 2147483648
        %v947 = vor.u32 1.1754944e-38, %v946
        %v948 = vsel %vm945, %v947, %v943
        %v949 = vmul.f32 1.0, %v948
        %v950 = vrcp.pop %v836
        %v951 = vmul.f32 %v836, %v950
        %v952 = vsub.f32 1.0, %v951
        %v953 = vmul.f32 %v950, %v952
        %v954 = vadd.f32 %v950, %v953
        %vm955 = vweird.f32 %v836
        %vm956 = vweird.f32 %v950
        %vm957 = vmor %vm955, %vm956
        %v958 = vsel %vm957, %v950, %v954
        %v959 = vand.u32 2147483647, %v836
        %vm960 = vcmp.eq.f32.partialorder %v959, 8.507059e+37
        %v961 = vand.u32 %v836, 2147483648
        %v962 = vor.u32 1.1754944e-38, %v961
        %v963 = vsel %vm960, %v962, %v958
        %v964 = vmul.f32 1.0, %v963
        %v965 = vrcp.pop %v837
        %v966 = vmul.f32 %v837, %v965
        %v967 = vsub.f32 1.0, %v966
        %v968 = vmul.f32 %v965, %v967
        %v969 = vadd.f32 %v965, %v968
        %vm970 = vweird.f32 %v837
        %vm971 = vweird.f32 %v965
        %vm972 = vmor %vm970, %vm971
        %v973 = vsel %vm972, %v965, %v969
        %v974 = vand.u32 2147483647, %v837
        %vm975 = vcmp.eq.f32.partialorder %v974, 8.507059e+37
        %v976 = vand.u32 %v837, 2147483648
        %v977 = vor.u32 1.1754944e-38, %v976
        %v978 = vsel %vm975, %v977, %v973
        %v979 = vmul.f32 1.0, %v978
        %v980 = vrcp.pop %v838
        %v981 = vmul.f32 %v838, %v980
        %v982 = vsub.f32 1.0, %v981
        %v983 = vmul.f32 %v980, %v982
        %v984 = vadd.f32 %v980, %v983
        %vm985 = vweird.f32 %v838
        %vm986 = vweird.f32 %v980
        %vm987 = vmor %vm985, %vm986
        %v988 = vsel %vm987, %v980, %v984
        %v989 = vand.u32 2147483647, %v838
        %vm990 = vcmp.eq.f32.partialorder %v989, 8.507059e+37
        %v991 = vand.u32 %v838, 2147483648
        %v992 = vor.u32 1.1754944e-38, %v991
        %v993 = vsel %vm990, %v992, %v988
        %v994 = vmul.f32 1.0, %v993
        %v995 = vrcp.pop %v839
        %v996 = vmul.f32 %v839, %v995
        %v997 = vsub.f32 1.0, %v996
        %v998 = vmul.f32 %v995, %v997
        %v999 = vadd.f32 %v995, %v998
        %vm1000 = vweird.f32 %v839
        %vm1001 = vweird.f32 %v995
        %vm1002 = vmor %vm1000, %vm1001
        %v1003 = vsel %vm1002, %v995, %v999
        %v1004 = vand.u32 2147483647, %v839
        %vm1005 = vcmp.eq.f32.partialorder %v1004, 8.507059e+37
        %v1006 = vand.u32 %v839, 2147483648
        %v1007 = vor.u32 1.1754944e-38, %v1006
        %v1008 = vsel %vm1005, %v1007, %v1003
        %v1009 = vmul.f32 1.0, %v1008
        %v1010 = vrcp.pop %v840
        %v1011 = vmul.f32 %v840, %v1010
        %v1012 = vsub.f32 1.0, %v1011
        %v1013 = vmul.f32 %v1010, %v1012
        %v1014 = vadd.f32 %v1010, %v1013
        %vm1015 = vweird.f32 %v840
        %vm1016 = vweird.f32 %v1010
        %vm1017 = vmor %vm1015, %vm1016
        %v1018 = vsel %vm1017, %v1010, %v1014
        %v1019 = vand.u32 2147483647, %v840
        %vm1020 = vcmp.eq.f32.partialorder %v1019, 8.507059e+37
        %v1021 = vand.u32 %v840, 2147483648
        %v1022 = vor.u32 1.1754944e-38, %v1021
        %v1023 = vsel %vm1020, %v1022, %v1018
        %v1024 = vmul.f32 1.0, %v1023
        %v1025 = vrcp.pop %v841
        %v1026 = vmul.f32 %v841, %v1025
        %v1027 = vsub.f32 1.0, %v1026
        %v1028 = vmul.f32 %v1025, %v1027
        %v1029 = vadd.f32 %v1025, %v1028
        %vm1030 = vweird.f32 %v841
        %vm1031 = vweird.f32 %v1025
        %vm1032 = vmor %vm1030, %vm1031
        %v1033 = vsel %vm1032, %v1025, %v1029
        %v1034 = vand.u32 2147483647, %v841
        %vm1035 = vcmp.eq.f32.partialorder %v1034, 8.507059e+37
        %v1036 = vand.u32 %v841, 2147483648
        %v1037 = vor.u32 1.1754944e-38, %v1036
        %v1038 = vsel %vm1035, %v1037, %v1033
        %v1039 = vmul.f32 1.0, %v1038
        %v1040 = vrcp.pop %v842
        %v1041 = vmul.f32 %v842, %v1040
        %v1042 = vsub.f32 1.0, %v1041
        %v1043 = vmul.f32 %v1040, %v1042
        %v1044 = vadd.f32 %v1040, %v1043
        %vm1045 = vweird.f32 %v842
        %vm1046 = vweird.f32 %v1040
        %vm1047 = vmor %vm1045, %vm1046
        %v1048 = vsel %vm1047, %v1040, %v1044
        %v1049 = vand.u32 2147483647, %v842
        %vm1050 = vcmp.eq.f32.partialorder %v1049, 8.507059e+37
        %v1051 = vand.u32 %v842, 2147483648
        %v1052 = vor.u32 1.1754944e-38, %v1051
        %v1053 = vsel %vm1050, %v1052, %v1048
        %v1054 = vmul.f32 1.0, %v1053
        %v1055 = vrcp.pop %v843
        %v1056 = vmul.f32 %v843, %v1055
        %v1057 = vsub.f32 1.0, %v1056
        %v1058 = vmul.f32 %v1055, %v1057
        %v1059 = vadd.f32 %v1055, %v1058
        %vm1060 = vweird.f32 %v843
        %vm1061 = vweird.f32 %v1055
        %vm1062 = vmor %vm1060, %vm1061
        %v1063 = vsel %vm1062, %v1055, %v1059
        %v1064 = vand.u32 2147483647, %v843
        %vm1065 = vcmp.eq.f32.partialorder %v1064, 8.507059e+37
        %v1066 = vand.u32 %v843, 2147483648
        %v1067 = vor.u32 1.1754944e-38, %v1066
        %v1068 = vsel %vm1065, %v1067, %v1063
        %v1069 = vmul.f32 1.0, %v1068
        %v1070 = vrcp.pop %v844
        %v1071 = vmul.f32 %v844, %v1070
        %v1072 = vsub.f32 1.0, %v1071
        %v1073 = vmul.f32 %v1070, %v1072
        %v1074 = vadd.f32 %v1070, %v1073
        %vm1075 = vweird.f32 %v844
        %vm1076 = vweird.f32 %v1070
        %vm1077 = vmor %vm1075, %vm1076
        %v1078 = vsel %vm1077, %v1070, %v1074
        %v1079 = vand.u32 2147483647, %v844
        %vm1080 = vcmp.eq.f32.partialorder %v1079, 8.507059e+37
        %v1081 = vand.u32 %v844, 2147483648
        %v1082 = vor.u32 1.1754944e-38, %v1081
        %v1083 = vsel %vm1080, %v1082, %v1078
        %v1084 = vmul.f32 1.0, %v1083
        %v1085 = vld [vmem:[%s5] sm:$0xff]
        %v1086 = vpack.c.bf16 %v1085, %v1085
        %v1087 = vpack.c.bf16 %v874, %v859
        %v1088 = vpack.c.bf16 %v904, %v889
        %v1089 = vpack.c.bf16 %v934, %v919
        %v1090 = vpack.c.bf16 %v964, %v949
        %v1091 = vpack.c.bf16 %v994, %v979
        %v1092 = vpack.c.bf16 %v1024, %v1009
        %v1093 = vpack.c.bf16 %v1054, %v1039
        %v1094 = vpack.c.bf16 %v1084, %v1069
        %v1095 = vld [vmem:[%s6] sm:$0xff]
        %1097 = vset.pattern.permute.xlu0 0
        %1098 = vperm.xlu0 %1097, %v1095
        %v1099 = vpop.permute.xlu0 %1098
        %v1102 = vsel %vm707, %v1086, 0
        %v1105 = vsel %vm707, %v1087, 0
        %v1108 = vsel %vm707, %v1088, 0
        %v1111 = vsel %vm707, %v1089, 0
        %v1114 = vsel %vm707, %v1090, 0
        %v1117 = vsel %vm707, %v1091, 0
        %v1120 = vsel %vm707, %v1092, 0
        %v1123 = vsel %vm707, %v1093, 0
        %v1126 = vsel %vm707, %v1094, 0
        %1128 = vmatpush.bf16.xpose.msra.mxu0 %v1126
        %1129 = vmatpush.bf16.xpose.msra.mxu0 %v1123
        %1130 = vmatpush.bf16.xpose.msra.mxu0 %v1120
        %1131 = vmatpush.bf16.xpose.msra.mxu0 %v1117
        %1132 = vmatpush.bf16.xpose.msra.mxu0 %v1114
        %1133 = vmatpush.bf16.xpose.msra.mxu0 %v1111
        %1134 = vmatpush.bf16.xpose.msra.mxu0 %v1108
        %1135 = vmatpush.bf16.xpose.msra.mxu0 %v1105
        %1136 = vmatmul.bf16.gmra.mxu0 %v1102
        %v1137 = vpop.f32.mrf.mxu0
        %v1138 = vadd.f32 %v1099, %v1137
        %v1139 = vpop.f32.mrf.mxu0
        %1140 = vdwg.mxu0
        %v1141 = vmax.f32 %v1138, 0.0
        %v1142 = vxor.u32 %v1141, 2147483648
        %v1143 = vmul.f32 %v1142, 1.442695
        %v1144 = vpow.pop %v1143
        %v1145 = vadd.f32 %v1144, 1.0
        %v1146 = vrcp.pop %v1145
        %v1147 = vmul.f32 %v1145, %v1146
        %v1148 = vsub.f32 1.0, %v1147
        %v1149 = vmul.f32 %v1146, %v1148
        %v1150 = vadd.f32 %v1146, %v1149
        %vm1151 = vweird.f32 %v1145
        %vm1152 = vweird.f32 %v1146
        %vm1153 = vmor %vm1151, %vm1152
        %v1154 = vsel %vm1153, %v1146, %v1150
        %v1155 = vand.u32 2147483647, %v1145
        %vm1156 = vcmp.eq.f32.partialorder %v1155, 8.507059e+37
        %v1157 = vand.u32 %v1145, 2147483648
        %v1158 = vor.u32 1.1754944e-38, %v1157
        %v1159 = vsel %vm1156, %v1158, %v1154
        %v1160 = vmul.f32 1.0, %v1159
        %1161 = vst [vmem:[%s272] sm:$0xff] %v1160
        %s1162 = sand.u32 %s181, 1
        %s1163 = scalar_lea.sflag [#allocation3], %s1162
        %s1164 = sand.u32 %s181, 1
        %s1165 = smul.addr %s1164, 8
        %s1166 = scalar_lea.vmem [#allocation2], %s1165
        // Predicated region
        $region49: #{_lambda_.1} parent=47 // pred_check
          %p1167 = pneg %p191
        $region50: #{_lambda_.1} parent=47 // pred_check_branch
          %1169 = sbr.rel (%p1167) target = $region52
        $region51: #{_lambda_.1} parent=47 // pred_region
          %1171 = vsyncadd %s1163, 0
          %s1172 = smul.addr %s21, 8
          %s1173 = scalar_lea.hbm %s7, %s1172
          %s1175 = sshll.u32 %s1166, 4
          %s1176 = int_to_ptr.vmem [resolvable:$true] %s1175
          %s1177 = sshll.u32 %s1173, 4
          %s1178 = int_to_ptr.hbm [resolvable:$true] %s1177
          %1180 = dma.vmem_to_hbm [thread:$0]  %s1176, 128, %s1178, %s1163
        $region52: #{_lambda_.1} parent=47 // pred_fallthru
          _
      $region48: #{_lambda_.1} parent=5 // pred_fallthru
        _
      %p1181 = scmp.le.s32.totalorder 2, %s16
      // Predicated region
      $region53: #{_lambda_.1} parent=5 // pred_check
        %p1182 = pneg %p1181
      $region54: #{_lambda_.1} parent=5 // pred_check_branch
        %1184 = sbr.rel (%p1182) target = $region56
      $region55: #{_lambda_.1} parent=5 // pred_region
        %s1185 = ssub.s32 %s16, 2
        // Predicated region
        $region57: #{_lambda_.1} parent=55 // pred_check
          %p1186 = pneg %p197
        $region58: #{_lambda_.1} parent=55 // pred_check_branch
          %1188 = sbr.rel (%p1186) target = $region60
        $region59: #{_lambda_.1} parent=55 // pred_region
          %s1189 = sand.u32 %s182, 1
          %s1190 = scalar_lea.sflag [#allocation3], %s1189
          %s1191 = sand.u32 %s182, 1
          %s1192 = smul.addr %s1191, 8
          %s1193 = scalar_lea.vmem [#allocation2], %s1192
          %1195 = dma.done %s1190, 128
        $region60: #{_lambda_.1} parent=55 // pred_fallthru
          _
      $region56: #{_lambda_.1} parent=5 // pred_fallthru
        _
    $region6: #{_lambda_.1} parent=1 // loop_footer
      %s20 = sadd.s32 1, %s16
    $region7: #{_lambda_.1} parent=1 // loop_footer_branch
      %15 = sbr.rel target = $region3
    $region8: #{_lambda_.1} parent=1 // loop_exit
      _
    %1196 = vsyncpa [#allocation3], 1
    %s1197 = scalar_lea.sflag [#allocation3], 1
    %1198 = vsyncpa %s1197, 1

</llo_original>
